<compile_context>
chip_gen: v7x
topology: tpu7x:2x2x1
jax: 0.10.0
libtpu: 0.0.40
codegen_flags: <defaults>
</compile_context>

<pallas_src>
import functools

import jax
import jax.numpy as jnp
from jax import lax
from jax.experimental import pallas as pl
from jax.experimental.pallas import tpu as pltpu


def _round_up(x, m):
    return ((x + m - 1) // m) * m


def _disc_block_kernel(p_ref, w_ref, gamma_ref, beta_ref, o_ref,
                       sum_s, sq_s, scale_s, shift_s,
                       *, alpha, eps, inv_rows):
    phase = pl.program_id(0)     # 0 = accumulate batch stats, 1 = normalize
    tile = pl.program_id(1)      # row tile index

    @pl.when(jnp.logical_and(phase == 0, tile == 0))
    def _init_stats():
        sum_s[...] = jnp.zeros_like(sum_s)
        sq_s[...] = jnp.zeros_like(sq_s)

    @pl.when(phase == 0)
    def _accumulate():
        # Conv as MXU matmul: (TR, Kp) @ (Kp, Cp) -> (TR, Cp), f32 accumulation.
        y = jnp.dot(p_ref[...], w_ref[...], preferred_element_type=jnp.float32)
        # Zero-padded rows contribute 0 to both sums; divide by true R later.
        sum_s[...] += jnp.sum(y, axis=0, keepdims=True)
        sq_s[...] += jnp.sum(y * y, axis=0, keepdims=True)

    @pl.when(jnp.logical_and(phase == 1, tile == 0))
    def _finalize_stats():
        mean = sum_s[...] * inv_rows
        var = sq_s[...] * inv_rows - mean * mean        # biased (train-mode) var
        scale = gamma_ref[...] * lax.rsqrt(var + eps)   # rsqrt -> EUP slot
        scale_s[...] = scale
        shift_s[...] = beta_ref[...] - mean * scale     # folded BN affine

    @pl.when(phase == 1)
    def _normalize():
        y = jnp.dot(p_ref[...], w_ref[...], preferred_element_type=jnp.float32)
        z = y * scale_s[...] + shift_s[...]             # single FMA per element
        o_ref[...] = jnp.where(z > 0, z, alpha * z)     # LeakyReLU


def _im2col_nchw(x, kh, kw, stride):
    """x: (N, C, H, W) -> patches (N*OH*OW, KH*KW*C), col = (i*KW + j)*C + c."""
    n, c, h, w = x.shape
    oh = (h - kh) // stride + 1
    ow = (w - kw) // stride + 1
    x_nhwc = jnp.transpose(x, (0, 2, 3, 1))
    cols = []
    for i in range(kh):
        for j in range(kw):
            cols.append(x_nhwc[:, i:i + stride * oh:stride,
                               j:j + stride * ow:stride, :])
    p = jnp.stack(cols, axis=3)                          # (N, OH, OW, KH*KW, C)
    return p.reshape(n * oh * ow, kh * kw * c), oh, ow


def discriminator_block(x, conv_w, conv_b, gamma, beta, *, stride, alpha=0.2,
                        eps=1e-5, tile_rows=512, mxu_dtype=jnp.bfloat16):
    """x: (N, C_in, H, W). conv_w: (C_out, C_in, KH, KW). Returns NCHW output."""
    del conv_b  # Training-mode BatchNorm cancels the conv bias exactly.

    n = x.shape[0]
    c_out, c_in, kh, kw = conv_w.shape

    patches, oh, ow = _im2col_nchw(x, kh, kw, stride)    # (R, K) f32
    rows, kdim = patches.shape

    # Pad to TPU-friendly (lane-dense) shapes: zero padding is exact for the
    # matmul and for the batch stats (we divide by the true row count).
    c_pad = _round_up(c_out, 128)
    k_pad = _round_up(kdim, 128)
    tile_rows = _round_up(min(tile_rows, rows), 8)
    r_pad = _round_up(rows, tile_rows)
    n_tiles = r_pad // tile_rows

    p_mat = jnp.zeros((r_pad, k_pad), mxu_dtype)
    p_mat = p_mat.at[:rows, :kdim].set(patches.astype(mxu_dtype))

    w_mat = jnp.transpose(conv_w, (2, 3, 1, 0)).reshape(kdim, c_out)
    w_pad = jnp.zeros((k_pad, c_pad), mxu_dtype)
    w_pad = w_pad.at[:kdim, :c_out].set(w_mat.astype(mxu_dtype))

    g_pad = jnp.zeros((1, c_pad), jnp.float32).at[0, :c_out].set(
        gamma.astype(jnp.float32))
    b_pad = jnp.zeros((1, c_pad), jnp.float32).at[0, :c_out].set(
        beta.astype(jnp.float32))

    kernel = functools.partial(_disc_block_kernel, alpha=alpha, eps=eps,
                               inv_rows=1.0 / rows)

    out_flat = pl.pallas_call(
        kernel,
        out_shape=jax.ShapeDtypeStruct((r_pad, c_pad), jnp.float32),
        grid_spec=pltpu.PrefetchScalarGridSpec(
            num_scalar_prefetch=0,
            grid=(2, n_tiles),                                  # (phase, row tile)
            in_specs=[
                pl.BlockSpec((tile_rows, k_pad), lambda ph, rt: (rt, 0)),
                pl.BlockSpec((k_pad, c_pad), lambda ph, rt: (0, 0)),
                pl.BlockSpec((1, c_pad), lambda ph, rt: (0, 0)),
                pl.BlockSpec((1, c_pad), lambda ph, rt: (0, 0)),
            ],
            # Phase 0 never writes the output; pin its block index to 0 so the
            # (untouched) buffer is never flushed; phase 1 walks the row tiles.
            out_specs=pl.BlockSpec((tile_rows, c_pad),
                                   lambda ph, rt: (ph * rt, 0)),
            scratch_shapes=[pltpu.VMEM((1, c_pad), jnp.float32)] * 4,
        ),
        compiler_params=pltpu.CompilerParams(
            dimension_semantics=("arbitrary", "arbitrary")),
    )(p_mat, w_pad, g_pad, b_pad)

    out = out_flat[:rows, :c_out]
    return jnp.transpose(out.reshape(n, oh, ow, c_out), (0, 3, 1, 2))


def _reference(x, conv_w, conv_b, gamma, beta, *, stride, alpha=0.2, eps=1e-5):
    y = lax.conv_general_dilated(
        x, conv_w, window_strides=(stride, stride), padding="VALID",
        dimension_numbers=("NCHW", "OIHW", "NCHW"))
    y = y + conv_b[None, :, None, None]
    mean = jnp.mean(y, axis=(0, 2, 3), keepdims=True)
    var = jnp.mean((y - mean) ** 2, axis=(0, 2, 3), keepdims=True)
    y = (y - mean) * lax.rsqrt(var + eps)
    y = y * gamma[None, :, None, None] + beta[None, :, None, None]
    return jnp.where(y > 0, y, alpha * y)


if __name__ == "__main__":
    # DiscriminatorBlock(in_channels=4, hidden_channel=8, kernel=4, stride=2)
    N, C_IN, H, W = 2, 4, 16, 16
    C_OUT, KH, KW, STRIDE, ALPHA = 8, 4, 4, 2, 0.2

    key = jax.random.PRNGKey(0)
    kx, kw_, kb = jax.random.split(key, 3)

    x = jax.random.normal(kx, (N, C_IN, H, W), dtype=jnp.float32)
    fan_in = C_IN * KH * KW
    bound = 1.0 / (fan_in ** 0.5)
    conv_w = jax.random.uniform(kw_, (C_OUT, C_IN, KH, KW), jnp.float32,
                                -bound, bound)
    conv_b = jax.random.uniform(kb, (C_OUT,), jnp.float32, -bound, bound)
    gamma = jnp.ones((C_OUT,), jnp.float32)
    beta = jnp.zeros((C_OUT,), jnp.float32)

    ref = _reference(x, conv_w, conv_b, gamma, beta, stride=STRIDE, alpha=ALPHA)

    # Performance path: bf16 MXU inputs, 2 row tiles (exercises the multi-tile
    # two-phase batch-stat accumulation).
    out = discriminator_block(x, conv_w, conv_b, gamma, beta, stride=STRIDE,
                              alpha=ALPHA, tile_rows=64,
                              mxu_dtype=jnp.bfloat16)
    out = jax.block_until_ready(out)
    assert out.shape == ref.shape == (N, C_OUT, 7, 7), out.shape
    assert jnp.allclose(out, ref, rtol=5e-2, atol=5e-2), \
        float(jnp.max(jnp.abs(out - ref)))

    # Precision path: f32 MXU inputs, single row tile (tight tolerance).
    out32 = discriminator_block(x, conv_w, conv_b, gamma, beta, stride=STRIDE,
                                alpha=ALPHA, mxu_dtype=jnp.float32)
    out32 = jax.block_until_ready(out32)
    assert jnp.allclose(out32, ref, rtol=2e-4, atol=2e-4), \
        float(jnp.max(jnp.abs(out32 - ref)))

    print("KERNEL_OK")
</pallas_src>

<mosaic_0001>
module attributes {stable_mosaic.version = 11 : i64} {
  func.func @_disc_block_kernel(%arg0: i32, %arg1: i32, %arg2: memref<64x128xbf16, #tpu.memory_space<vmem>>, %arg3: memref<128x128xbf16, #tpu.memory_space<vmem>>, %arg4: memref<1x128xf32, #tpu.memory_space<vmem>>, %arg5: memref<1x128xf32, #tpu.memory_space<vmem>>, %arg6: memref<64x128xf32, #tpu.memory_space<vmem>>, %arg7: memref<1x128xf32, #tpu.memory_space<vmem>>, %arg8: memref<1x128xf32, #tpu.memory_space<vmem>>, %arg9: memref<1x128xf32, #tpu.memory_space<vmem>>, %arg10: memref<1x128xf32, #tpu.memory_space<vmem>>) attributes {dimension_semantics = [#tpu.dimension_semantics<arbitrary>, #tpu.dimension_semantics<arbitrary>], iteration_bounds = array<i64: 2, 2>, scalar_prefetch = 0 : i64, scratch_operands = 4 : i64, tpu.core_type = #tpu.core_type<tc>, window_params = [{transform_indices = @transform_0, window_bounds = array<i64: 64, 128>}, {pipeline_mode = #tpu.pipeline_mode<synchronous>, transform_indices = @transform_1, window_bounds = array<i64: 128, 128>}, {pipeline_mode = #tpu.pipeline_mode<synchronous>, transform_indices = @transform_2, window_bounds = array<i64: 1, 128>}, {pipeline_mode = #tpu.pipeline_mode<synchronous>, transform_indices = @transform_3, window_bounds = array<i64: 1, 128>}, {transform_indices = @transform_4, window_bounds = array<i64: 64, 128>}]} {
    %c0_i32 = arith.constant 0 : i32
    %0 = arith.cmpi eq, %arg0, %c0_i32 : i32
    %c0_i32_0 = arith.constant 0 : i32
    %1 = arith.cmpi eq, %arg1, %c0_i32_0 : i32
    %2 = arith.andi %0, %1 : i1
    %3 = arith.extui %2 : i1 to i32
    %c0_i32_1 = arith.constant 0 : i32
    %4 = arith.cmpi ne, %3, %c0_i32_1 : i32
    scf.if %4 {
      %cst = arith.constant 0.000000e+00 : f32
      %16 = vector.broadcast %cst : f32 to vector<1x128xf32>
      %c0 = arith.constant 0 : index
      %c0_8 = arith.constant 0 : index
      %17 = vector.load %arg7[%c0, %c0_8] : memref<1x128xf32, #tpu.memory_space<vmem>>, vector<1x128xf32>
      tpu.vector_store %arg7[%c0, %c0_8], %16 {strides = array<i32>} : memref<1x128xf32, #tpu.memory_space<vmem>>, vector<1x128xf32>,
      %cst_9 = arith.constant 0.000000e+00 : f32
      %18 = vector.broadcast %cst_9 : f32 to vector<1x128xf32>
      %c0_10 = arith.constant 0 : index
      %c0_11 = arith.constant 0 : index
      %19 = vector.load %arg8[%c0_10, %c0_11] : memref<1x128xf32, #tpu.memory_space<vmem>>, vector<1x128xf32>
      tpu.vector_store %arg8[%c0_10, %c0_11], %18 {strides = array<i32>} : memref<1x128xf32, #tpu.memory_space<vmem>>, vector<1x128xf32>,
    } else {
    }
    %c0_i32_2 = arith.constant 0 : i32
    %5 = arith.cmpi eq, %arg0, %c0_i32_2 : i32
    %6 = arith.extui %5 : i1 to i32
    %c0_i32_3 = arith.constant 0 : i32
    %7 = arith.cmpi ne, %6, %c0_i32_3 : i32
    scf.if %7 {
      %c0 = arith.constant 0 : index
      %c0_8 = arith.constant 0 : index
      %16 = vector.load %arg2[%c0, %c0_8] : memref<64x128xbf16, #tpu.memory_space<vmem>>, vector<64x128xbf16>
      %c0_9 = arith.constant 0 : index
      %c0_10 = arith.constant 0 : index
      %17 = vector.load %arg3[%c0_9, %c0_10] : memref<128x128xbf16, #tpu.memory_space<vmem>>, vector<128x128xbf16>
      %cst = arith.constant dense<0.000000e+00> : vector<64x128xf32>
      %18 = tpu.matmul %16, %17, %cst {dimension_numbers = #tpu.dot_dimension_numbers<[1], [0], [0], [1], [0, 0, 1, 1], [], []>} : vector<64x128xbf16>, vector<128x128xbf16>, vector<64x128xf32> -> vector<64x128xf32>
      %c0_11 = arith.constant 0 : index
      %c0_12 = arith.constant 0 : index
      %19 = vector.load %arg7[%c0_11, %c0_12] : memref<1x128xf32, #tpu.memory_space<vmem>>, vector<1x128xf32>
      %cst_13 = arith.constant dense<0.000000e+00> : vector<128xf32>
      %20 = vector.multi_reduction <add>, %18, %cst_13 [0] : vector<64x128xf32> to vector<128xf32>
      %21 = vector.shape_cast %20 : vector<128xf32> to vector<1x128xf32>
      %22 = arith.addf %19, %21 : vector<1x128xf32>
      %c0_14 = arith.constant 0 : index
      %c0_15 = arith.constant 0 : index
      %23 = vector.load %arg7[%c0_14, %c0_15] : memref<1x128xf32, #tpu.memory_space<vmem>>, vector<1x128xf32>
      tpu.vector_store %arg7[%c0_14, %c0_15], %22 {strides = array<i32>} : memref<1x128xf32, #tpu.memory_space<vmem>>, vector<1x128xf32>,
      %c0_16 = arith.constant 0 : index
      %c0_17 = arith.constant 0 : index
      %24 = vector.load %arg8[%c0_16, %c0_17] : memref<1x128xf32, #tpu.memory_space<vmem>>, vector<1x128xf32>
      %25 = arith.mulf %18, %18 : vector<64x128xf32>
      %cst_18 = arith.constant dense<0.000000e+00> : vector<128xf32>
      %26 = vector.multi_reduction <add>, %25, %cst_18 [0] : vector<64x128xf32> to vector<128xf32>
      %27 = vector.shape_cast %26 : vector<128xf32> to vector<1x128xf32>
      %28 = arith.addf %24, %27 : vector<1x128xf32>
      %c0_19 = arith.constant 0 : index
      %c0_20 = arith.constant 0 : index
      %29 = vector.load %arg8[%c0_19, %c0_20] : memref<1x128xf32, #tpu.memory_space<vmem>>, vector<1x128xf32>
      tpu.vector_store %arg8[%c0_19, %c0_20], %28 {strides = array<i32>} : memref<1x128xf32, #tpu.memory_space<vmem>>, vector<1x128xf32>,
    } else {
    }
    %c1_i32 = arith.constant 1 : i32
    %8 = arith.cmpi eq, %arg0, %c1_i32 : i32
    %c0_i32_4 = arith.constant 0 : i32
    %9 = arith.cmpi eq, %arg1, %c0_i32_4 : i32
    %10 = arith.andi %8, %9 : i1
    %11 = arith.extui %10 : i1 to i32
    %c0_i32_5 = arith.constant 0 : i32
    %12 = arith.cmpi ne, %11, %c0_i32_5 : i32
    scf.if %12 {
      %c0 = arith.constant 0 : index
      %c0_8 = arith.constant 0 : index
      %16 = vector.load %arg7[%c0, %c0_8] : memref<1x128xf32, #tpu.memory_space<vmem>>, vector<1x128xf32>
      %cst = arith.constant 0.0102040814 : f32
      %17 = vector.broadcast %cst : f32 to vector<1x128xf32>
      %18 = arith.mulf %16, %17 : vector<1x128xf32>
      %c0_9 = arith.constant 0 : index
      %c0_10 = arith.constant 0 : index
      %19 = vector.load %arg8[%c0_9, %c0_10] : memref<1x128xf32, #tpu.memory_space<vmem>>, vector<1x128xf32>
      %cst_11 = arith.constant 0.0102040814 : f32
      %20 = vector.broadcast %cst_11 : f32 to vector<1x128xf32>
      %21 = arith.mulf %19, %20 : vector<1x128xf32>
      %22 = arith.mulf %18, %18 : vector<1x128xf32>
      %23 = arith.subf %21, %22 : vector<1x128xf32>
      %c0_12 = arith.constant 0 : index
      %c0_13 = arith.constant 0 : index
      %24 = vector.load %arg4[%c0_12, %c0_13] : memref<1x128xf32, #tpu.memory_space<vmem>>, vector<1x128xf32>
      %cst_14 = arith.constant 9.99999974E-6 : f32
      %25 = vector.broadcast %cst_14 : f32 to vector<1x128xf32>
      %26 = arith.addf %23, %25 : vector<1x128xf32>
      %27 = math.rsqrt %26 : vector<1x128xf32>
      %28 = arith.mulf %24, %27 : vector<1x128xf32>
      %c0_15 = arith.constant 0 : index
      %c0_16 = arith.constant 0 : index
      %29 = vector.load %arg9[%c0_15, %c0_16] : memref<1x128xf32, #tpu.memory_space<vmem>>, vector<1x128xf32>
      tpu.vector_store %arg9[%c0_15, %c0_16], %28 {strides = array<i32>} : memref<1x128xf32, #tpu.memory_space<vmem>>, vector<1x128xf32>,
      %c0_17 = arith.constant 0 : index
      %c0_18 = arith.constant 0 : index
      %30 = vector.load %arg5[%c0_17, %c0_18] : memref<1x128xf32, #tpu.memory_space<vmem>>, vector<1x128xf32>
      %31 = arith.mulf %18, %28 : vector<1x128xf32>
      %32 = arith.subf %30, %31 : vector<1x128xf32>
      %c0_19 = arith.constant 0 : index
      %c0_20 = arith.constant 0 : index
      %33 = vector.load %arg10[%c0_19, %c0_20] : memref<1x128xf32, #tpu.memory_space<vmem>>, vector<1x128xf32>
      tpu.vector_store %arg10[%c0_19, %c0_20], %32 {strides = array<i32>} : memref<1x128xf32, #tpu.memory_space<vmem>>, vector<1x128xf32>,
    } else {
    }
    %c1_i32_6 = arith.constant 1 : i32
    %13 = arith.cmpi eq, %arg0, %c1_i32_6 : i32
    %14 = arith.extui %13 : i1 to i32
    %c0_i32_7 = arith.constant 0 : i32
    %15 = arith.cmpi ne, %14, %c0_i32_7 : i32
    scf.if %15 {
      %c0 = arith.constant 0 : index
      %c0_8 = arith.constant 0 : index
      %16 = vector.load %arg2[%c0, %c0_8] : memref<64x128xbf16, #tpu.memory_space<vmem>>, vector<64x128xbf16>
      %c0_9 = arith.constant 0 : index
      %c0_10 = arith.constant 0 : index
      %17 = vector.load %arg3[%c0_9, %c0_10] : memref<128x128xbf16, #tpu.memory_space<vmem>>, vector<128x128xbf16>
      %cst = arith.constant dense<0.000000e+00> : vector<64x128xf32>
      %18 = tpu.matmul %16, %17, %cst {dimension_numbers = #tpu.dot_dimension_numbers<[1], [0], [0], [1], [0, 0, 1, 1], [], []>} : vector<64x128xbf16>, vector<128x128xbf16>, vector<64x128xf32> -> vector<64x128xf32>
      %c0_11 = arith.constant 0 : index
      %c0_12 = arith.constant 0 : index
      %19 = vector.load %arg9[%c0_11, %c0_12] : memref<1x128xf32, #tpu.memory_space<vmem>>, vector<1x128xf32>
      %20 = vector.broadcast %19 : vector<1x128xf32> to vector<64x128xf32>
      %21 = arith.mulf %18, %20 : vector<64x128xf32>
      %c0_13 = arith.constant 0 : index
      %c0_14 = arith.constant 0 : index
      %22 = vector.load %arg10[%c0_13, %c0_14] : memref<1x128xf32, #tpu.memory_space<vmem>>, vector<1x128xf32>
      %23 = vector.broadcast %22 : vector<1x128xf32> to vector<64x128xf32>
      %24 = arith.addf %21, %23 : vector<64x128xf32>
      %cst_15 = arith.constant 0.000000e+00 : f32
      %25 = vector.broadcast %cst_15 : f32 to vector<64x128xf32>
      %26 = arith.cmpf ogt, %24, %25 : vector<64x128xf32>
      %cst_16 = arith.constant 2.000000e-01 : f32
      %27 = vector.broadcast %cst_16 : f32 to vector<64x128xf32>
      %28 = arith.mulf %27, %24 : vector<64x128xf32>
      %29 = arith.select %26, %24, %28 : vector<64x128xi1>, vector<64x128xf32>
      %c0_17 = arith.constant 0 : index
      %c0_18 = arith.constant 0 : index
      %30 = vector.load %arg6[%c0_17, %c0_18] : memref<64x128xf32, #tpu.memory_space<vmem>>, vector<64x128xf32>
      tpu.vector_store %arg6[%c0_17, %c0_18], %29 {strides = array<i32>} : memref<64x128xf32, #tpu.memory_space<vmem>>, vector<64x128xf32>,
    } else {
    }
    return
  }
  func.func @transform_0(%arg0: i32, %arg1: i32) -> (i32, i32) {
    %c0_i32 = arith.constant 0 : i32
    %c0_i32_0 = arith.constant 0 : i32
    return %arg1, %c0_i32 : i32, i32
  }
  func.func @transform_1(%arg0: i32, %arg1: i32) -> (i32, i32) {
    %c0_i32 = arith.constant 0 : i32
    %c0_i32_0 = arith.constant 0 : i32
    %c0_i32_1 = arith.constant 0 : i32
    return %c0_i32, %c0_i32_0 : i32, i32
  }
  func.func @transform_2(%arg0: i32, %arg1: i32) -> (i32, i32) {
    %c0_i32 = arith.constant 0 : i32
    %c0_i32_0 = arith.constant 0 : i32
    %c0_i32_1 = arith.constant 0 : i32
    return %c0_i32, %c0_i32_0 : i32, i32
  }
  func.func @transform_3(%arg0: i32, %arg1: i32) -> (i32, i32) {
    %c0_i32 = arith.constant 0 : i32
    %c0_i32_0 = arith.constant 0 : i32
    %c0_i32_1 = arith.constant 0 : i32
    return %c0_i32, %c0_i32_0 : i32, i32
  }
  func.func @transform_4(%arg0: i32, %arg1: i32) -> (i32, i32) {
    %0 = arith.muli %arg0, %arg1 : i32
    %c0_i32 = arith.constant 0 : i32
    %c0_i32_0 = arith.constant 0 : i32
    return %0, %c0_i32 : i32, i32
  }
}

</mosaic_0001>

<llo_original>
// kernel: tpu_custom_call.1
$region0: #{tpu_custom_call.1}
  #allocation0 [shape = 'u32[]', space=smem, size = 0x4, offset = 0x4, fixed_abs, tag = 'smem constant byte address 0x4 - core index']
  #allocation1 [shape = 'u32[144,128]{1,0:T(1,128)}', space=vmem, size = 0x12000, scoped, tag = 'internal scratch']
  #allocation2 [shape = 'f32[1,128]{1,0:T(1,128)}', space=vmem, size = 0x200, scoped, tag = 'scratch operand']
  #allocation3 [shape = 'f32[1,128]{1,0:T(1,128)}', space=vmem, size = 0x200, scoped, tag = 'scratch operand']
  #allocation4 [shape = 'f32[1,128]{1,0:T(1,128)}', space=vmem, size = 0x200, scoped, tag = 'scratch operand']
  #allocation5 [shape = 'f32[1,128]{1,0:T(1,128)}', space=vmem, size = 0x200, scoped, tag = 'scratch operand']
  %s0 = inlined_call_operand.hbm [shape: bf16[128,128], index: 0, kind: input, shape index: {}]
  %s1 = inlined_call_operand.hbm [shape: bf16[128,128], index: 1, kind: input, shape index: {}]
  %s2 = inlined_call_operand.vmem [shape: f32[1,128], index: 2, kind: input, shape index: {}]
  %s3 = inlined_call_operand.vmem [shape: f32[1,128], index: 3, kind: input, shape index: {}]
  %s4 = inlined_call_operand.hbm [shape: f32[128,128], index: 4, kind: output, shape index: {}]
  %s5 = sld [smem:[#allocation0]]
  $region73: #{tpu_custom_call.1} parent=0
    _
  %s7 = ssub.s32 1, %s5
  %s8 = scalar_select 0, %s7, %s5
  $region1: #{tpu_custom_call.1} parent=0
    #allocation6 [shape = 'u8[32768]{0}', space=vmem, size = 0x8000, scoped, tag = 'input window, operand 0']
    #allocation7 [shape = 's32[2]{0}', space=sflag, size = 0x8, scoped, tag = 'scoped memory for tpu_custom_call.1']
    #allocation8 [shape = 's32[2]{0}', space=sflag, size = 0x8, scoped, tag = 'scoped memory for tpu_custom_call.1']
    #allocation9 [shape = 'u8[32768]{0}', space=vmem, size = 0x8000, scoped, tag = 'input window, operand 1, single buffered']
    #allocation10 [shape = 's32[1]{0}', space=sflag, size = 0x4, scoped, tag = 'scoped memory for tpu_custom_call.1']
    #allocation11 [shape = 'u8[65536]{0}', space=vmem, size = 0x10000, scoped, tag = 'output window, operand 0']
    %9 = vsyncpa [#allocation7], 0
    %s10 = scalar_lea.sflag [#allocation7], 1
    %11 = vsyncpa %s10, 0
    %12 = vsyncpa [#allocation10], 0
    %13 = vsyncpa [#allocation8], 0
    %s14 = scalar_lea.sflag [#allocation8], 1
    %15 = vsyncpa %s14, 0
    loop: start=0, step=1, limit=6
    $region2: #{tpu_custom_call.1} parent=1 // loop_pre_header
      _
    $region3: #{tpu_custom_call.1} parent=1 // loop_header
      %s17 = sphi 0, %s21
      %p18 = scmp.ge.s32.totalorder %s17, 6
      %s24 = sphi 0, %s36
      %s25 = sphi 0, %s32
      %s26 = sphi 0, %s24
      %s27 = sphi 0, %s25
      %s28 = sphi 0, %s26
      %s29 = sphi 0, %s27
      %s39 = sphi 0, %s41
      %s42 = sphi 0, %s39
      %s43 = sphi 0, %s42
      %s59 = sphi 0, %s43
      %s63 = sphi 0, %s63
      %s65 = sphi 0, %s63
      %s66 = sphi 0, %s65
      %s80 = sphi 0, %s66
      %s84 = sphi 0, %s84
      %s86 = sphi 0, %s84
      %s87 = sphi 0, %s86
      %s101 = sphi 0, %s87
      %s105 = sphi 0, %s105
      %s107 = sphi 0, %s105
      %s108 = sphi 0, %s107
      %s122 = sphi 0, %s108
      %s130 = sphi 0, %s132
      %s133 = sphi 0, %s130
      %s134 = sphi 0, %s133
      %s150 = sphi 0, %s134
    $region4: #{tpu_custom_call.1} parent=1 // loop_header_branch
      %20 = sbr.rel (%p18) target = $region8
    $region5: #{tpu_custom_call.1} parent=1 // loop_body
      %s22 = ssub.s32 %s17, 1
      %s23 = ssub.s32 %s17, 2
      %s30 = sadd.s32 1, %s25
      %p31 = scmp.ge.s32.totalorder %s30, 2
      %s32 = scalar_select %p31, 0, %s30
      %s33 = sadd.s32 1, %s24
      %s34 = scalar_select %p31, %s33, %s24
      %p35 = scmp.ge.s32.totalorder %s34, 2
      %s36 = scalar_select %p35, 0, %s34
      %s37 = ssub.s32 %s25, %s32
      %p38 = scmp.eq.s32.totalorder %s37, 0
      %s40 = sadd.s32 %s39, 1
      %s41 = scalar_select %p38, %s39, %s40
      %p44 = pneg %p38
      %p45 = scmp.eq.s32.totalorder %s17, 3
      %p46 = por %p44, %p45
      %p47 = scmp.ne.s32.totalorder %s39, %s42
      %p48 = scmp.eq.s32.totalorder %s17, 0
      %p49 = por %p47, %p48
      %p50 = scmp.ne.s32.totalorder %s39, %s42
      %p51 = scmp.eq.s32.totalorder %s22, 3
      %p52 = por %p50, %p51
      %p53 = scmp.ne.s32.totalorder %s42, %s43
      %p54 = scmp.eq.s32.totalorder %s22, 0
      %p55 = por %p53, %p54
      %p56 = scmp.ne.s32.totalorder %s42, %s43
      %p57 = scmp.eq.s32.totalorder %s23, 3
      %p58 = por %p56, %p57
      %p60 = scmp.ne.s32.totalorder %s43, %s59
      %p61 = scmp.eq.s32.totalorder %s23, 0
      %p62 = por %p60, %p61
      %s64 = sadd.s32 %s63, 1
      %p67 = scmp.eq.s32.totalorder %s17, 3
      %p68 = scmp.ne.s32.totalorder %s63, %s65
      %p69 = scmp.eq.s32.totalorder %s17, 0
      %p70 = por %p68, %p69
      %p71 = scmp.ne.s32.totalorder %s63, %s65
      %p72 = scmp.eq.s32.totalorder %s22, 3
      %p73 = por %p71, %p72
      %p74 = scmp.ne.s32.totalorder %s65, %s66
      %p75 = scmp.eq.s32.totalorder %s22, 0
      %p76 = por %p74, %p75
      %p77 = scmp.ne.s32.totalorder %s65, %s66
      %p78 = scmp.eq.s32.totalorder %s23, 3
      %p79 = por %p77, %p78
      %p81 = scmp.ne.s32.totalorder %s66, %s80
      %p82 = scmp.eq.s32.totalorder %s23, 0
      %p83 = por %p81, %p82
      %s85 = sadd.s32 %s84, 1
      %p88 = scmp.eq.s32.totalorder %s17, 3
      %p89 = scmp.ne.s32.totalorder %s84, %s86
      %p90 = scmp.eq.s32.totalorder %s17, 0
      %p91 = por %p89, %p90
      %p92 = scmp.ne.s32.totalorder %s84, %s86
      %p93 = scmp.eq.s32.totalorder %s22, 3
      %p94 = por %p92, %p93
      %p95 = scmp.ne.s32.totalorder %s86, %s87
      %p96 = scmp.eq.s32.totalorder %s22, 0
      %p97 = por %p95, %p96
      %p98 = scmp.ne.s32.totalorder %s86, %s87
      %p99 = scmp.eq.s32.totalorder %s23, 3
      %p100 = por %p98, %p99
      %p102 = scmp.ne.s32.totalorder %s87, %s101
      %p103 = scmp.eq.s32.totalorder %s23, 0
      %p104 = por %p102, %p103
      %s106 = sadd.s32 %s105, 1
      %p109 = scmp.eq.s32.totalorder %s17, 3
      %p110 = scmp.ne.s32.totalorder %s105, %s107
      %p111 = scmp.eq.s32.totalorder %s17, 0
      %p112 = por %p110, %p111
      %p113 = scmp.ne.s32.totalorder %s105, %s107
      %p114 = scmp.eq.s32.totalorder %s22, 3
      %p115 = por %p113, %p114
      %p116 = scmp.ne.s32.totalorder %s107, %s108
      %p117 = scmp.eq.s32.totalorder %s22, 0
      %p118 = por %p116, %p117
      %p119 = scmp.ne.s32.totalorder %s107, %s108
      %p120 = scmp.eq.s32.totalorder %s23, 3
      %p121 = por %p119, %p120
      %p123 = scmp.ne.s32.totalorder %s108, %s122
      %p124 = scmp.eq.s32.totalorder %s23, 0
      %p125 = por %p123, %p124
      %s126 = smul.u32 %s24, %s25
      %s127 = smul.u32 %s36, %s32
      %s128 = ssub.s32 %s126, %s127
      %p129 = scmp.eq.s32.totalorder %s128, 0
      %s131 = sadd.s32 %s130, 1
      %s132 = scalar_select %p129, %s130, %s131
      %p135 = pneg %p129
      %p136 = scmp.eq.s32.totalorder %s17, 3
      %p137 = por %p135, %p136
      %p138 = scmp.ne.s32.totalorder %s130, %s133
      %p139 = scmp.eq.s32.totalorder %s17, 0
      %p140 = por %p138, %p139
      %p141 = scmp.ne.s32.totalorder %s130, %s133
      %p142 = scmp.eq.s32.totalorder %s22, 3
      %p143 = por %p141, %p142
      %p144 = scmp.ne.s32.totalorder %s133, %s134
      %p145 = scmp.eq.s32.totalorder %s22, 0
      %p146 = por %p144, %p145
      %p147 = scmp.ne.s32.totalorder %s133, %s134
      %p148 = scmp.eq.s32.totalorder %s23, 3
      %p149 = por %p147, %p148
      %p151 = scmp.ne.s32.totalorder %s134, %s150
      %p152 = scmp.eq.s32.totalorder %s23, 0
      %p153 = por %p151, %p152
      %p154 = scmp.le.s32.totalorder 1, %s17
      %p155 = scmp.lt.s32.totalorder %s17, 5
      %p156 = pnand %p154, %p155
      %p157 = pneg %p156
      // Predicated region
      $region9: #{tpu_custom_call.1} parent=5 // pred_check
        _
      $region10: #{tpu_custom_call.1} parent=5 // pred_check_branch
        %159 = sbr.rel (%p156) target = $region12
      $region11: #{tpu_custom_call.1} parent=5 // pred_region
        %s160 = ssub.s32 %s17, 1
        // Predicated region
        $region13: #{tpu_custom_call.1} parent=11 // pred_check
          %p161 = pneg %p76
        $region14: #{tpu_custom_call.1} parent=11 // pred_check_branch
          %163 = sbr.rel (%p161) target = $region16
        $region15: #{tpu_custom_call.1} parent=11 // pred_region
          %s165 = ssub.s32 1024, 1024
          %166 = vsyncadd [#allocation10], %s165
          %s167 = sshll.u32 [#allocation9], 4
          %s168 = int_to_ptr.vmem [resolvable:$true] %s167
          %173 = dma.hbm_to_vmem [thread:$0]  %s1, 1024, %s168, [#allocation10], 64, 64, 4
        $region16: #{tpu_custom_call.1} parent=11 // pred_fallthru
          _
        // Predicated region
        $region17: #{tpu_custom_call.1} parent=11 // pred_check
          %p174 = pneg %p97
        $region18: #{tpu_custom_call.1} parent=11 // pred_check_branch
          %176 = sbr.rel (%p174) target = $region20
        $region19: #{tpu_custom_call.1} parent=11 // pred_region
          _
        $region20: #{tpu_custom_call.1} parent=11 // pred_fallthru
          _
        // Predicated region
        $region21: #{tpu_custom_call.1} parent=11 // pred_check
          %p177 = pneg %p118
        $region22: #{tpu_custom_call.1} parent=11 // pred_check_branch
          %179 = sbr.rel (%p177) target = $region24
        $region23: #{tpu_custom_call.1} parent=11 // pred_region
          _
        $region24: #{tpu_custom_call.1} parent=11 // pred_fallthru
          _
      $region12: #{tpu_custom_call.1} parent=5 // pred_fallthru
        _
      %p180 = scmp.lt.s32.totalorder %s17, 4
      // Predicated region
      $region25: #{tpu_custom_call.1} parent=5 // pred_check
        %p181 = pneg %p180
      $region26: #{tpu_custom_call.1} parent=5 // pred_check_branch
        %183 = sbr.rel (%p181) target = $region28
      $region27: #{tpu_custom_call.1} parent=5 // pred_region
        // Predicated region
        $region29: #{tpu_custom_call.1} parent=27 // pred_check
          %p184 = pneg %p49
        $region30: #{tpu_custom_call.1} parent=27 // pred_check_branch
          %186 = sbr.rel (%p184) target = $region32
        $region31: #{tpu_custom_call.1} parent=27 // pred_region
          %s187 = sand.u32 %s39, 1
          %s188 = scalar_lea.sflag [#allocation7], %s187
          %s189 = sand.u32 %s39, 1
          %s190 = smul.addr %s189, 32
          %s191 = scalar_lea.vmem [#allocation6], %s190
          %s192 = smul.u32 8, %s25
          %s194 = ssub.s32 512, 512
          %195 = vsyncadd %s188, %s194
          %s196 = smul.addr %s192, 64
          %s197 = scalar_lea.hbm %s0, %s196
          %s198 = sshll.u32 %s191, 4
          %s199 = int_to_ptr.vmem [resolvable:$true] %s198
          %204 = dma.hbm_to_vmem [thread:$0]  %s197, 512, %s199, %s188, 64, 64, 4
        $region32: #{tpu_custom_call.1} parent=27 // pred_fallthru
          _
      $region28: #{tpu_custom_call.1} parent=5 // pred_fallthru
        _
      %p205 = scmp.le.s32.totalorder 1, %s17
      %p206 = scmp.lt.s32.totalorder %s17, 5
      %p207 = pnand %p205, %p206
      %p208 = pneg %p207
      // Predicated region
      $region33: #{tpu_custom_call.1} parent=5 // pred_check
        _
      $region34: #{tpu_custom_call.1} parent=5 // pred_check_branch
        %210 = sbr.rel (%p207) target = $region36
      $region35: #{tpu_custom_call.1} parent=5 // pred_region
        %s211 = ssub.s32 %s17, 1
        %s212 = sand.u32 %s42, 1
        %s213 = scalar_lea.sflag [#allocation7], %s212
        %s214 = sand.u32 %s42, 1
        %s215 = smul.addr %s214, 32
        %s216 = scalar_lea.vmem [#allocation6], %s215
        // Predicated region
        $region37: #{tpu_custom_call.1} parent=35 // pred_check
          %p217 = pneg %p55
        $region38: #{tpu_custom_call.1} parent=35 // pred_check_branch
          %219 = sbr.rel (%p217) target = $region40
        $region39: #{tpu_custom_call.1} parent=35 // pred_region
          %220 = dma.done %s213, 512
        $region40: #{tpu_custom_call.1} parent=35 // pred_fallthru
          _
        // Predicated region
        $region41: #{tpu_custom_call.1} parent=35 // pred_check
          %p221 = pneg %p76
        $region42: #{tpu_custom_call.1} parent=35 // pred_check_branch
          %223 = sbr.rel (%p221) target = $region44
        $region43: #{tpu_custom_call.1} parent=35 // pred_region
          %224 = dma.done [#allocation10], 1024
        $region44: #{tpu_custom_call.1} parent=35 // pred_fallthru
          _
        %s225 = sand.u32 %s42, 1
        %s226 = scalar_lea.sflag [#allocation7], %s225
        %s227 = sand.u32 %s42, 1
        %s228 = smul.addr %s227, 32
        %s229 = scalar_lea.vmem [#allocation6], %s228
        %p230 = pneg %p55
        %p231 = pneg %p52
        %p232 = pneg %p76
        %p233 = pneg %p73
        %p234 = pneg %p97
        %p235 = pneg %p94
        %p236 = pneg %p118
        %p237 = pneg %p115
        %p238 = pneg %p146
        %p239 = pneg %p143
        %s240 = sand.u32 %s133, 1
        %s241 = scalar_lea.sflag [#allocation8], %s240
        %s242 = sand.u32 %s133, 1
        %s243 = smul.addr %s242, 64
        %s244 = scalar_lea.vmem [#allocation11], %s243
        %s245 = smul.u32 8, %s27
        %s246 = smul.u32 %s26, %s27
        %s247 = smul.u32 8, %s246
        %p249 = scmp.eq.s32.totalorder %s26, 0
        %p250 = scmp.eq.s32.totalorder %s27, 0
        %p251 = pnand %p249, %p250
        %p252 = pneg %p251
        // Predicated region
        $region45: #{tpu_custom_call.1} parent=35 // pred_check
          _
        $region46: #{tpu_custom_call.1} parent=35 // pred_check_branch
          %254 = sbr.rel (%p251) target = $region48
        $region47: #{tpu_custom_call.1} parent=35 // pred_region
          %255 = vst [vmem:[#allocation2] sm:$0x1] 0.0
          %256 = vst [vmem:[#allocation3] sm:$0x1] 0.0
        $region48: #{tpu_custom_call.1} parent=35 // pred_fallthru
          _
        // Predicated region
        $region49: #{tpu_custom_call.1} parent=35 // pred_check
          %p257 = pneg %p249
        $region50: #{tpu_custom_call.1} parent=35 // pred_check_branch
          %259 = sbr.rel (%p257) target = $region52
        $region51: #{tpu_custom_call.1} parent=35 // pred_region
          %v260 = vld [vmem:[%s216] sm:$0xf]
          %v261 = vld [vmem:[%s216 + $0x4] sm:$0xf]
          %v262 = vld [vmem:[%s216 + $0x8] sm:$0xf]
          %v263 = vld [vmem:[%s216 + $0xc] sm:$0xf]
          %v264 = vld [vmem:[%s216 + $0x10] sm:$0xf]
          %v265 = vld [vmem:[%s216 + $0x14] sm:$0xf]
          %v266 = vld [vmem:[%s216 + $0x18] sm:$0xf]
          %v267 = vld [vmem:[%s216 + $0x1c] sm:$0xf]
          %v268 = vld [vmem:[#allocation9] sm:$0xf]
          %v269 = vld [vmem:[#allocation9 + $0x4] sm:$0xf]
          %v270 = vld [vmem:[#allocation9 + $0x8] sm:$0xf]
          %v271 = vld [vmem:[#allocation9 + $0xc] sm:$0xf]
          %v272 = vld [vmem:[#allocation9 + $0x10] sm:$0xf]
          %v273 = vld [vmem:[#allocation9 + $0x14] sm:$0xf]
          %v274 = vld [vmem:[#allocation9 + $0x18] sm:$0xf]
          %v275 = vld [vmem:[#allocation9 + $0x1c] sm:$0xf]
          %v276 = vld [vmem:[#allocation9 + $0x20] sm:$0xf]
          %v277 = vld [vmem:[#allocation9 + $0x24] sm:$0xf]
          %v278 = vld [vmem:[#allocation9 + $0x28] sm:$0xf]
          %v279 = vld [vmem:[#allocation9 + $0x2c] sm:$0xf]
          %v280 = vld [vmem:[#allocation9 + $0x30] sm:$0xf]
          %v281 = vld [vmem:[#allocation9 + $0x34] sm:$0xf]
          %v282 = vld [vmem:[#allocation9 + $0x38] sm:$0xf]
          %v283 = vld [vmem:[#allocation9 + $0x3c] sm:$0xf]
          %v292 = vunpack.c.l.b16 %v260
          %v293 = vunpack.c.l.b16 %v261
          %v294 = vunpack.c.l.b16 %v262
          %v295 = vunpack.c.l.b16 %v263
          %v296 = vunpack.c.l.b16 %v264
          %v297 = vunpack.c.l.b16 %v265
          %v298 = vunpack.c.l.b16 %v266
          %v299 = vunpack.c.l.b16 %v267
          %v300 = vpack.c.b16 %v293, %v292
          %v301 = vpack.c.b16 %v295, %v294
          %v302 = vpack.c.b16 %v297, %v296
          %v303 = vpack.c.b16 %v299, %v298
          %v324 = vunpack.c.l.b16 %v268
          %v325 = vunpack.c.l.b16 %v269
          %v326 = vunpack.c.l.b16 %v270
          %v327 = vunpack.c.l.b16 %v271
          %v328 = vunpack.c.l.b16 %v272
          %v329 = vunpack.c.l.b16 %v273
          %v330 = vunpack.c.l.b16 %v274
          %v331 = vunpack.c.l.b16 %v275
          %v332 = vunpack.c.l.b16 %v276
          %v333 = vunpack.c.l.b16 %v277
          %v334 = vunpack.c.l.b16 %v278
          %v335 = vunpack.c.l.b16 %v279
          %v336 = vunpack.c.l.b16 %v280
          %v337 = vunpack.c.l.b16 %v281
          %v338 = vunpack.c.l.b16 %v282
          %v339 = vunpack.c.l.b16 %v283
          %v340 = vpack.c.b16 %v325, %v324
          %v341 = vpack.c.b16 %v327, %v326
          %v342 = vpack.c.b16 %v329, %v328
          %v343 = vpack.c.b16 %v331, %v330
          %v344 = vpack.c.b16 %v333, %v332
          %v345 = vpack.c.b16 %v335, %v334
          %v346 = vpack.c.b16 %v337, %v336
          %v347 = vpack.c.b16 %v339, %v338
          %356 = vmatprep.subr.bf16.mxu0 0
          %357 = vmatpush1.bf16.msra.mxu0 %v340
          %358 = vmatprep.subr.bf16.mxu0 0
          %359 = vmatpush1.bf16.msra.mxu0 %v341
          %360 = vmatprep.subr.bf16.mxu0 0
          %361 = vmatpush1.bf16.msra.mxu0 %v342
          %362 = vmatprep.subr.bf16.mxu0 0
          %363 = vmatpush1.bf16.msra.mxu0 %v343
          %364 = vmatprep.subr.bf16.mxu0 0
          %365 = vmatpush1.bf16.msra.mxu0 %v344
          %366 = vmatprep.subr.bf16.mxu0 0
          %367 = vmatpush1.bf16.msra.mxu0 %v345
          %368 = vmatprep.subr.bf16.mxu0 0
          %369 = vmatpush1.bf16.msra.mxu0 %v346
          %370 = vmatprep.subr.bf16.mxu0 0
          %371 = vmatpush1.bf16.msra.mxu0 %v347
          %372 = vmatprep.subr.bf16.mxu0 0
          %373 = vmatpush1.bf16.msra.mxu0 0
          %374 = vmatprep.subr.bf16.mxu0 0
          %375 = vmatpush1.bf16.msra.mxu0 0
          %376 = vmatprep.subr.bf16.mxu0 0
          %377 = vmatpush1.bf16.msra.mxu0 0
          %378 = vmatprep.subr.bf16.mxu0 0
          %379 = vmatpush1.bf16.msra.mxu0 0
          %380 = vmatprep.subr.bf16.mxu0 0
          %381 = vmatpush1.bf16.msra.mxu0 0
          %382 = vmatprep.subr.bf16.mxu0 0
          %383 = vmatpush1.bf16.msra.mxu0 0
          %384 = vmatprep.subr.bf16.mxu0 0
          %385 = vmatpush1.bf16.msra.mxu0 0
          %386 = vmatprep.subr.bf16.mxu0 0
          %387 = vmatpush1.bf16.msra.mxu0 0
          %388 = vmatprep.mubr.bf16.mxu0 0
          %389 = vmatmul.mubr.bf16.gmra.mrb[0].mxu0 %v300
          %v390 = vpop.f32.mrb[0].mxu0
          %v391 = vadd.f32 0.0, %v390
          %v392 = vpop.f32.mrb[0].mxu0
          %v393 = vpop.f32.mrb[0].mxu0
          %v394 = vadd.f32 0.0, %v393
          %v395 = vpop.f32.mrb[0].mxu0
          %396 = vmatprep.mubr.bf16.mxu0 0
          %397 = vmatmul.mubr.bf16.gmra.mrb[0].mxu0 %v301
          %v398 = vpop.f32.mrb[0].mxu0
          %v399 = vadd.f32 0.0, %v398
          %v400 = vpop.f32.mrb[0].mxu0
          %v401 = vpop.f32.mrb[0].mxu0
          %v402 = vadd.f32 0.0, %v401
          %v403 = vpop.f32.mrb[0].mxu0
          %404 = vmatprep.mubr.bf16.mxu0 0
          %405 = vmatmul.mubr.bf16.gmra.mrb[0].mxu0 %v302
          %v406 = vpop.f32.mrb[0].mxu0
          %v407 = vadd.f32 0.0, %v406
          %v408 = vpop.f32.mrb[0].mxu0
          %v409 = vpop.f32.mrb[0].mxu0
          %v410 = vadd.f32 0.0, %v409
          %v411 = vpop.f32.mrb[0].mxu0
          %412 = vmatprep.mubr.bf16.mxu0 0
          %413 = vmatmul.mubr.bf16.gmra.mrb[0].mxu0 %v303
          %v414 = vpop.f32.mrb[0].mxu0
          %v415 = vadd.f32 0.0, %v414
          %v416 = vpop.f32.mrb[0].mxu0
          %v417 = vpop.f32.mrb[0].mxu0
          %v418 = vadd.f32 0.0, %v417
          %v419 = vpop.f32.mrb[0].mxu0
          %420 = vdwg.mxu0
          %v421 = vld [vmem:[#allocation2] sm:$0x1]
          %v422 = vadd.f32 %v391, %v394
          %v423 = vadd.f32 %v422, %v399
          %v424 = vadd.f32 %v423, %v402
          %v425 = vadd.f32 %v424, %v407
          %v426 = vadd.f32 %v425, %v410
          %v427 = vadd.f32 %v426, %v415
          %v428 = vadd.f32 %v427, %v418
          %v429 = vrot.slane %v428, 4
          %v430 = vadd.f32 %v428, %v429
          %v431 = vrot.slane %v430, 2
          %v432 = vadd.f32 %v430, %v431
          %v433 = vrot.slane %v432, 1
          %v434 = vadd.f32 %v432, %v433
          %v435 = vadd.f32 %v421, %v434
          %436 = vst [vmem:[#allocation2] sm:$0x1] %v435
          %v437 = vld [vmem:[#allocation3] sm:$0x1]
          %v438 = vmul.f32 %v391, %v391
          %v439 = vmul.f32 %v394, %v394
          %v440 = vmul.f32 %v399, %v399
          %v441 = vmul.f32 %v402, %v402
          %v442 = vmul.f32 %v407, %v407
          %v443 = vmul.f32 %v410, %v410
          %v444 = vmul.f32 %v415, %v415
          %v445 = vmul.f32 %v418, %v418
          %v446 = vadd.f32 %v438, %v439
          %v447 = vadd.f32 %v446, %v440
          %v448 = vadd.f32 %v447, %v441
          %v449 = vadd.f32 %v448, %v442
          %v450 = vadd.f32 %v449, %v443
          %v451 = vadd.f32 %v450, %v444
          %v452 = vadd.f32 %v451, %v445
          %v453 = vrot.slane %v452, 4
          %v454 = vadd.f32 %v452, %v453
          %v455 = vrot.slane %v454, 2
          %v456 = vadd.f32 %v454, %v455
          %v457 = vrot.slane %v456, 1
          %v458 = vadd.f32 %v456, %v457
          %v459 = vadd.f32 %v437, %v458
          %460 = vst [vmem:[#allocation3] sm:$0x1] %v459
        $region52: #{tpu_custom_call.1} parent=35 // pred_fallthru
          _
        %p461 = scmp.eq.s32.totalorder %s26, 1
        %p462 = pnand %p461, %p250
        %p463 = pneg %p462
        // Predicated region
        $region53: #{tpu_custom_call.1} parent=35 // pred_check
          _
        $region54: #{tpu_custom_call.1} parent=35 // pred_check_branch
          %465 = sbr.rel (%p462) target = $region56
        $region55: #{tpu_custom_call.1} parent=35 // pred_region
          %v466 = vld [vmem:[#allocation2] sm:$0x1]
          %v467 = vmul.f32 %v466, 0.010204081
          %v468 = vld [vmem:[#allocation3] sm:$0x1]
          %v469 = vmul.f32 %v468, 0.010204081
          %v470 = vmul.f32 %v467, %v467
          %v471 = vsub.f32 %v469, %v470
          %v472 = vld [vmem:[%s2] sm:$0x1]
          %v473 = vadd.f32 %v471, 1e-05
          %v474 = vrsqrt.pop %v473
          %v475 = vmul.f32 %v472, %v474
          %476 = vst [vmem:[#allocation4] sm:$0x1] %v475
          %v477 = vld [vmem:[%s3] sm:$0x1]
          %v478 = vmul.f32 %v467, %v475
          %v479 = vsub.f32 %v477, %v478
          %480 = vst [vmem:[#allocation5] sm:$0x1] %v479
        $region56: #{tpu_custom_call.1} parent=35 // pred_fallthru
          _
        // Predicated region
        $region57: #{tpu_custom_call.1} parent=35 // pred_check
          %p481 = pneg %p461
        $region58: #{tpu_custom_call.1} parent=35 // pred_check_branch
          %483 = sbr.rel (%p481) target = $region60
        $region59: #{tpu_custom_call.1} parent=35 // pred_region
          %v484 = vld [vmem:[%s216] sm:$0xf]
          %v485 = vld [vmem:[%s216 + $0x4] sm:$0xf]
          %v486 = vld [vmem:[%s216 + $0x8] sm:$0xf]
          %v487 = vld [vmem:[%s216 + $0xc] sm:$0xf]
          %v488 = vld [vmem:[%s216 + $0x10] sm:$0xf]
          %v489 = vld [vmem:[%s216 + $0x14] sm:$0xf]
          %v490 = vld [vmem:[%s216 + $0x18] sm:$0xf]
          %v491 = vld [vmem:[%s216 + $0x1c] sm:$0xf]
          %v492 = vld [vmem:[#allocation9] sm:$0xf]
          %v493 = vld [vmem:[#allocation9 + $0x4] sm:$0xf]
          %v494 = vld [vmem:[#allocation9 + $0x8] sm:$0xf]
          %v495 = vld [vmem:[#allocation9 + $0xc] sm:$0xf]
          %v496 = vld [vmem:[#allocation9 + $0x10] sm:$0xf]
          %v497 = vld [vmem:[#allocation9 + $0x14] sm:$0xf]
          %v498 = vld [vmem:[#allocation9 + $0x18] sm:$0xf]
          %v499 = vld [vmem:[#allocation9 + $0x1c] sm:$0xf]
          %v500 = vld [vmem:[#allocation9 + $0x20] sm:$0xf]
          %v501 = vld [vmem:[#allocation9 + $0x24] sm:$0xf]
          %v502 = vld [vmem:[#allocation9 + $0x28] sm:$0xf]
          %v503 = vld [vmem:[#allocation9 + $0x2c] sm:$0xf]
          %v504 = vld [vmem:[#allocation9 + $0x30] sm:$0xf]
          %v505 = vld [vmem:[#allocation9 + $0x34] sm:$0xf]
          %v506 = vld [vmem:[#allocation9 + $0x38] sm:$0xf]
          %v507 = vld [vmem:[#allocation9 + $0x3c] sm:$0xf]
          %v516 = vunpack.c.l.b16 %v484
          %v517 = vunpack.c.l.b16 %v485
          %v518 = vunpack.c.l.b16 %v486
          %v519 = vunpack.c.l.b16 %v487
          %v520 = vunpack.c.l.b16 %v488
          %v521 = vunpack.c.l.b16 %v489
          %v522 = vunpack.c.l.b16 %v490
          %v523 = vunpack.c.l.b16 %v491
          %v524 = vpack.c.b16 %v517, %v516
          %v525 = vpack.c.b16 %v519, %v518
          %v526 = vpack.c.b16 %v521, %v520
          %v527 = vpack.c.b16 %v523, %v522
          %v548 = vunpack.c.l.b16 %v492
          %v549 = vunpack.c.l.b16 %v493
          %v550 = vunpack.c.l.b16 %v494
          %v551 = vunpack.c.l.b16 %v495
          %v552 = vunpack.c.l.b16 %v496
          %v553 = vunpack.c.l.b16 %v497
          %v554 = vunpack.c.l.b16 %v498
          %v555 = vunpack.c.l.b16 %v499
          %v556 = vunpack.c.l.b16 %v500
          %v557 = vunpack.c.l.b16 %v501
          %v558 = vunpack.c.l.b16 %v502
          %v559 = vunpack.c.l.b16 %v503
          %v560 = vunpack.c.l.b16 %v504
          %v561 = vunpack.c.l.b16 %v505
          %v562 = vunpack.c.l.b16 %v506
          %v563 = vunpack.c.l.b16 %v507
          %v564 = vpack.c.b16 %v549, %v548
          %v565 = vpack.c.b16 %v551, %v550
          %v566 = vpack.c.b16 %v553, %v552
          %v567 = vpack.c.b16 %v555, %v554
          %v568 = vpack.c.b16 %v557, %v556
          %v569 = vpack.c.b16 %v559, %v558
          %v570 = vpack.c.b16 %v561, %v560
          %v571 = vpack.c.b16 %v563, %v562
          %580 = vmatprep.subr.bf16.mxu0 0
          %581 = vmatpush1.bf16.msra.mxu0 %v564
          %582 = vmatprep.subr.bf16.mxu0 0
          %583 = vmatpush1.bf16.msra.mxu0 %v565
          %584 = vmatprep.subr.bf16.mxu0 0
          %585 = vmatpush1.bf16.msra.mxu0 %v566
          %586 = vmatprep.subr.bf16.mxu0 0
          %587 = vmatpush1.bf16.msra.mxu0 %v567
          %588 = vmatprep.subr.bf16.mxu0 0
          %589 = vmatpush1.bf16.msra.mxu0 %v568
          %590 = vmatprep.subr.bf16.mxu0 0
          %591 = vmatpush1.bf16.msra.mxu0 %v569
          %592 = vmatprep.subr.bf16.mxu0 0
          %593 = vmatpush1.bf16.msra.mxu0 %v570
          %594 = vmatprep.subr.bf16.mxu0 0
          %595 = vmatpush1.bf16.msra.mxu0 %v571
          %596 = vmatprep.subr.bf16.mxu0 0
          %597 = vmatpush1.bf16.msra.mxu0 0
          %598 = vmatprep.subr.bf16.mxu0 0
          %599 = vmatpush1.bf16.msra.mxu0 0
          %600 = vmatprep.subr.bf16.mxu0 0
          %601 = vmatpush1.bf16.msra.mxu0 0
          %602 = vmatprep.subr.bf16.mxu0 0
          %603 = vmatpush1.bf16.msra.mxu0 0
          %604 = vmatprep.subr.bf16.mxu0 0
          %605 = vmatpush1.bf16.msra.mxu0 0
          %606 = vmatprep.subr.bf16.mxu0 0
          %607 = vmatpush1.bf16.msra.mxu0 0
          %608 = vmatprep.subr.bf16.mxu0 0
          %609 = vmatpush1.bf16.msra.mxu0 0
          %610 = vmatprep.subr.bf16.mxu0 0
          %611 = vmatpush1.bf16.msra.mxu0 0
          %612 = vmatprep.mubr.bf16.mxu0 0
          %613 = vmatmul.mubr.bf16.gmra.mrb[0].mxu0 %v524
          %v614 = vpop.f32.mrb[0].mxu0
          %v615 = vadd.f32 0.0, %v614
          %v616 = vpop.f32.mrb[0].mxu0
          %v617 = vpop.f32.mrb[0].mxu0
          %v618 = vadd.f32 0.0, %v617
          %v619 = vpop.f32.mrb[0].mxu0
          %620 = vmatprep.mubr.bf16.mxu0 0
          %621 = vmatmul.mubr.bf16.gmra.mrb[0].mxu0 %v525
          %v622 = vpop.f32.mrb[0].mxu0
          %v623 = vadd.f32 0.0, %v622
          %v624 = vpop.f32.mrb[0].mxu0
          %v625 = vpop.f32.mrb[0].mxu0
          %v626 = vadd.f32 0.0, %v625
          %v627 = vpop.f32.mrb[0].mxu0
          %628 = vmatprep.mubr.bf16.mxu0 0
          %629 = vmatmul.mubr.bf16.gmra.mrb[0].mxu0 %v526
          %v630 = vpop.f32.mrb[0].mxu0
          %v631 = vadd.f32 0.0, %v630
          %v632 = vpop.f32.mrb[0].mxu0
          %v633 = vpop.f32.mrb[0].mxu0
          %v634 = vadd.f32 0.0, %v633
          %v635 = vpop.f32.mrb[0].mxu0
          %636 = vmatprep.mubr.bf16.mxu0 0
          %637 = vmatmul.mubr.bf16.gmra.mrb[0].mxu0 %v527
          %v638 = vpop.f32.mrb[0].mxu0
          %v639 = vadd.f32 0.0, %v638
          %v640 = vpop.f32.mrb[0].mxu0
          %v641 = vpop.f32.mrb[0].mxu0
          %v642 = vadd.f32 0.0, %v641
          %v643 = vpop.f32.mrb[0].mxu0
          %644 = vdwg.mxu0
          %v645 = vld [vmem:[#allocation4] sm:$0x1]
          %v647 = vlaneseq
          %v648 = vshrl.u32 %v647, 7
          %v649 = vsub.s32 0, %v648
          %v650 = vrot.slane %v645, %v649
          %v652 = vmul.f32 %v615, %v650
          %v653 = vmul.f32 %v618, %v650
          %v654 = vmul.f32 %v623, %v650
          %v655 = vmul.f32 %v626, %v650
          %v656 = vmul.f32 %v631, %v650
          %v657 = vmul.f32 %v634, %v650
          %v658 = vmul.f32 %v639, %v650
          %v659 = vmul.f32 %v642, %v650
          %v660 = vld [vmem:[#allocation5] sm:$0x1]
          %v662 = vlaneseq
          %v663 = vshrl.u32 %v662, 7
          %v664 = vsub.s32 0, %v663
          %v665 = vrot.slane %v660, %v664
          %v667 = vadd.f32 %v652, %v665
          %v668 = vadd.f32 %v653, %v665
          %v669 = vadd.f32 %v654, %v665
          %v670 = vadd.f32 %v655, %v665
          %v671 = vadd.f32 %v656, %v665
          %v672 = vadd.f32 %v657, %v665
          %v673 = vadd.f32 %v658, %v665
          %v674 = vadd.f32 %v659, %v665
          %vm675 = vcmp.gt.f32.partialorder %v667, 0.0
          %vm676 = vcmp.gt.f32.partialorder %v668, 0.0
          %vm677 = vcmp.gt.f32.partialorder %v669, 0.0
          %vm678 = vcmp.gt.f32.partialorder %v670, 0.0
          %vm679 = vcmp.gt.f32.partialorder %v671, 0.0
          %vm680 = vcmp.gt.f32.partialorder %v672, 0.0
          %vm681 = vcmp.gt.f32.partialorder %v673, 0.0
          %vm682 = vcmp.gt.f32.partialorder %v674, 0.0
          %v683 = vmul.f32 %v667, 0.2
          %v684 = vmul.f32 %v668, 0.2
          %v685 = vmul.f32 %v669, 0.2
          %v686 = vmul.f32 %v670, 0.2
          %v687 = vmul.f32 %v671, 0.2
          %v688 = vmul.f32 %v672, 0.2
          %v689 = vmul.f32 %v673, 0.2
          %v690 = vmul.f32 %v674, 0.2
          %v691 = vsel %vm675, %v667, %v683
          %v692 = vsel %vm676, %v668, %v684
          %v693 = vsel %vm677, %v669, %v685
          %v694 = vsel %vm678, %v670, %v686
          %v695 = vsel %vm679, %v671, %v687
          %v696 = vsel %vm680, %v672, %v688
          %v697 = vsel %vm681, %v673, %v689
          %v698 = vsel %vm682, %v674, %v690
          %699 = vst [vmem:[%s244] sm:$0xff] %v691
          %700 = vst [vmem:[%s244 + $0x8] sm:$0xff] %v692
          %701 = vst [vmem:[%s244 + $0x10] sm:$0xff] %v693
          %702 = vst [vmem:[%s244 + $0x18] sm:$0xff] %v694
          %703 = vst [vmem:[%s244 + $0x20] sm:$0xff] %v695
          %704 = vst [vmem:[%s244 + $0x28] sm:$0xff] %v696
          %705 = vst [vmem:[%s244 + $0x30] sm:$0xff] %v697
          %706 = vst [vmem:[%s244 + $0x38] sm:$0xff] %v698
        $region60: #{tpu_custom_call.1} parent=35 // pred_fallthru
          _
        %s707 = sand.u32 %s133, 1
        %s708 = scalar_lea.sflag [#allocation8], %s707
        %s709 = sand.u32 %s133, 1
        %s710 = smul.addr %s709, 64
        %s711 = scalar_lea.vmem [#allocation11], %s710
        // Predicated region
        $region61: #{tpu_custom_call.1} parent=35 // pred_check
          %p712 = pneg %p143
        $region62: #{tpu_custom_call.1} parent=35 // pred_check_branch
          %714 = sbr.rel (%p712) target = $region64
        $region63: #{tpu_custom_call.1} parent=35 // pred_region
          %s715 = smul.u32 %s26, %s27
          %s716 = smul.u32 8, %s715
          %s718 = ssub.s32 1024, 1024
          %719 = vsyncadd %s708, %s718
          %s720 = smul.addr %s716, 128
          %s721 = scalar_lea.hbm %s4, %s720
          %s722 = sshll.u32 %s711, 4
          %s723 = int_to_ptr.vmem [resolvable:$true] %s722
          %728 = dma.vmem_to_hbm [thread:$0]  %s723, 1024, %s721, %s708, 128, 128, 8
        $region64: #{tpu_custom_call.1} parent=35 // pred_fallthru
          _
      $region36: #{tpu_custom_call.1} parent=5 // pred_fallthru
        _
      %p729 = scmp.le.s32.totalorder 2, %s17
      // Predicated region
      $region65: #{tpu_custom_call.1} parent=5 // pred_check
        %p730 = pneg %p729
      $region66: #{tpu_custom_call.1} parent=5 // pred_check_branch
        %732 = sbr.rel (%p730) target = $region68
      $region67: #{tpu_custom_call.1} parent=5 // pred_region
        %s733 = ssub.s32 %s17, 2
        // Predicated region
        $region69: #{tpu_custom_call.1} parent=67 // pred_check
          %p734 = pneg %p149
        $region70: #{tpu_custom_call.1} parent=67 // pred_check_branch
          %736 = sbr.rel (%p734) target = $region72
        $region71: #{tpu_custom_call.1} parent=67 // pred_region
          %s737 = sand.u32 %s134, 1
          %s738 = scalar_lea.sflag [#allocation8], %s737
          %s739 = sand.u32 %s134, 1
          %s740 = smul.addr %s739, 64
          %s741 = scalar_lea.vmem [#allocation11], %s740
          %742 = dma.done %s738, 1024
        $region72: #{tpu_custom_call.1} parent=67 // pred_fallthru
          _
      $region68: #{tpu_custom_call.1} parent=5 // pred_fallthru
        _
    $region6: #{tpu_custom_call.1} parent=1 // loop_footer
      %s21 = sadd.s32 1, %s17
    $region7: #{tpu_custom_call.1} parent=1 // loop_footer_branch
      %16 = sbr.rel target = $region3
    $region8: #{tpu_custom_call.1} parent=1 // loop_exit
      _
    %743 = vsyncpa [#allocation7], 1
    %s744 = scalar_lea.sflag [#allocation7], 1
    %745 = vsyncpa %s744, 1
    %746 = vsyncpa [#allocation10], 1
    %747 = vsyncpa [#allocation8], 1
    %s748 = scalar_lea.sflag [#allocation8], 1
    %749 = vsyncpa %s748, 1

</llo_original>
